<compile_context>
chip_gen: v7x
topology: tpu7x:2x2x1
jax: 0.10.0
libtpu: 0.0.40
codegen_flags: <defaults>
</compile_context>

<pallas_src>
import functools

import jax
import jax.numpy as jnp
from jax.experimental import pallas as pl
from jax.experimental.pallas import tpu as pltpu


_TARGET_BLOCK_BYTES = 4 * 1024 * 1024   # ~4 MiB of input per block
_MIN_BLOCK_BYTES = 1 * 1024 * 1024      # don't shrink blocks below this for step count
_TARGET_GRID_STEPS = 8                  # >= ~3-4 steps per v7x TensorCore
_VMEM_LIMIT_BYTES = 48 * 1024 * 1024    # baseline scoped-VMEM override


def _modalnorm_kernel(gama_ref, beta_ref, x_ref, o_ref, *, hw_valid):
    # x_ref: (rows_per_tile, HW) block in VMEM.  The HW (lane) axis is the full
    # array extent, so reductions over it are exact (Mosaic masks padded lanes).
    f32 = jnp.float32
    inv_hw = f32(1.0 / hw_valid)
    # torch.var default is unbiased (ddof=1).  NOTE: torch returns NaN for an
    # unbiased var of a single element (HW == 1); the max(..., 1) guard yields
    # var = 0 instead of NaN.
    inv_nm1 = f32(1.0 / max(hw_valid - 1, 1))

    # Pass 1: mean.  Re-reading x_ref per pass (instead of keeping one big f32
    # upcast live across the reductions) keeps VMEM/vreg pressure low; the
    # extra VMEM read passes are free in an HBM-bandwidth-bound kernel.
    mean = jnp.sum(x_ref[...].astype(f32), axis=-1, keepdims=True) * inv_hw

    # Pass 2: unbiased variance via centered squares (numerically stable,
    # unlike E[x^2] - E[x]^2 with a clamp).
    centered = x_ref[...].astype(f32) - mean
    var = jnp.sum(centered * centered, axis=-1, keepdims=True) * inv_nm1

    gama = gama_ref[0]
    beta = beta_ref[0]
    scale = gama * jax.lax.rsqrt(var + f32(1e-6))   # (rows, 1)
    bias = beta - mean * scale                       # (rows, 1)

    # Pass 3: one fused mul+add per element, cast back to the I/O dtype.
    o_ref[...] = (x_ref[...].astype(f32) * scale + bias).astype(o_ref.dtype)


def _sublane_multiple(dtype):
    # f32 -> 8, bf16/f16 -> 16, int8/fp8 -> 32 (native packed-sublane rounding).
    return max(8, 32 // jnp.dtype(dtype).itemsize)


def _vmem_cap_bytes():
    try:
        return int(pltpu.get_tpu_info().vmem_capacity_bytes)
    except Exception:
        return 64 * 1024 * 1024   # smallest physical VMEM across v5e/v6e/v7x


def _pick_rows_per_tile(nc, hw, itemsize, sublane):
    bpr = max(1, hw * itemsize)            # input bytes per row

    def round_up(v):
        return max(sublane, ((v + sublane - 1) // sublane) * sublane)

    # Largest block <= ~_TARGET_BLOCK_BYTES of input data.
    rows_by_vmem = max(sublane, (_TARGET_BLOCK_BYTES // bpr) // sublane * sublane)
    # Keep >= ~_TARGET_GRID_STEPS grid steps when NC allows (DMA/compute
    # overlap + both v7x TensorCores busy) ...
    rows_by_grid = round_up(pl.cdiv(nc, _TARGET_GRID_STEPS))
    rows = min(rows_by_vmem, rows_by_grid)
    # ... but never shrink a block below ~_MIN_BLOCK_BYTES just for step count.
    if rows * bpr < _MIN_BLOCK_BYTES:
        rows = min(rows_by_vmem, round_up(pl.cdiv(_MIN_BLOCK_BYTES, bpr)))
    # A block never needs more rows than the whole array; using exactly NC rows
    # is always a legal block shape (dim == full array dim), and avoids a
    # partial last block for small NC.
    if rows >= nc:
        rows = nc
    return rows


def _pick_vmem_limit(rows, hw, itemsize):
    block_in = rows * hw * itemsize
    # 2x double-buffered input + 2x double-buffered output + ~1 f32 temp tile,
    # plus slack.
    needed = 4 * block_in + rows * hw * 4 + (4 << 20)
    cap = max(_vmem_cap_bytes() - (8 << 20), 16 << 20)
    return int(min(max(_VMEM_LIMIT_BYTES, needed), cap))


def modal_norm(x, gama, beta, *, rows_per_tile=None):
    """x: NCHW float array. gama, beta: shape (1,) scalars (nn.Parameter)."""
    N, C, H, W = x.shape
    NC, HW = N * C, H * W

    # No wrapper-side padding / slicing: the last block dim equals the full HW
    # extent, so Mosaic handles any sub-128 lane edge internally with masked
    # edge loads/stores.  HBM traffic stays at exactly one read + one write.
    x2 = x.reshape(NC, HW)
    itemsize = x2.dtype.itemsize
    sublane = _sublane_multiple(x2.dtype)

    if rows_per_tile is None:
        rows_per_tile = _pick_rows_per_tile(NC, HW, itemsize, sublane)
    # TODO(synk): for extreme spatial sizes where even a minimum-row block
    # exceeds physical VMEM (e.g. 1024x1024 f32), a second reduction grid axis
    # over HW chunks with scratch partial sums would be required.

    grid = pl.cdiv(NC, rows_per_tile)   # partial last block: OOB rows' writes
                                        # are masked; rows are independent.

    out = pl.pallas_call(
        functools.partial(_modalnorm_kernel, hw_valid=HW),
        out_shape=jax.ShapeDtypeStruct((NC, HW), x.dtype),
        grid_spec=pltpu.PrefetchScalarGridSpec(
            num_scalar_prefetch=0,
            grid=(grid,),
            in_specs=[
                pl.BlockSpec(memory_space=pltpu.MemorySpace.SMEM),  # gama (1,)
                pl.BlockSpec(memory_space=pltpu.MemorySpace.SMEM),  # beta (1,)
                pl.BlockSpec((rows_per_tile, HW), lambda i: (i, 0)),
            ],
            out_specs=pl.BlockSpec((rows_per_tile, HW), lambda i: (i, 0)),
        ),
        compiler_params=pltpu.CompilerParams(
            dimension_semantics=("parallel",),
            vmem_limit_bytes=_pick_vmem_limit(rows_per_tile, HW, itemsize)),
    )(gama.astype(jnp.float32), beta.astype(jnp.float32), x2)

    return out.reshape(N, C, H, W)


def modal_norm_ref(x, gama, beta):
    """Pure-JAX reference mirroring the PyTorch forward."""
    xf = x.astype(jnp.float32)
    mean = jnp.mean(xf, axis=(2, 3), keepdims=True)
    var = jnp.var(xf, axis=(2, 3), keepdims=True, ddof=1)  # unbiased
    x_hat = (xf - mean) / jnp.sqrt(var + 1e-6)
    return gama[0] * x_hat + beta[0]


if __name__ == "__main__":
    key = jax.random.PRNGKey(0)

    # --- Primary check: module-default params, HW multiple of 128 -----------
    N, C, H, W = 2, 4, 16, 16
    x = jax.random.normal(key, (N, C, H, W), dtype=jnp.float32)
    gama = jnp.ones((1,), dtype=jnp.float32)   # nn.Parameter(torch.ones(1))
    beta = jnp.zeros((1,), dtype=jnp.float32)  # nn.Parameter(torch.zeros(1))

    out = modal_norm(x, gama, beta)
    out = jax.block_until_ready(out)
    ref = modal_norm_ref(x, gama, beta)
    assert out.shape == (N, C, H, W)
    assert jnp.allclose(out, ref, atol=1e-4, rtol=1e-4), \
        f"max err {jnp.max(jnp.abs(out - ref))}"

    # --- Secondary check: non-128 HW (masked lane edge, no padding),
    #     odd NC, non-trivial gama/beta -------------------------------------
    key2 = jax.random.PRNGKey(0)
    N2, C2, H2, W2 = 3, 5, 14, 14          # NC=15, HW=196 (not lane-aligned)
    x2 = jax.random.normal(key2, (N2, C2, H2, W2), dtype=jnp.float32)
    gama2 = jnp.full((1,), 1.5, dtype=jnp.float32)
    beta2 = jnp.full((1,), -0.25, dtype=jnp.float32)

    out2 = modal_norm(x2, gama2, beta2)
    out2 = jax.block_until_ready(out2)
    ref2 = modal_norm_ref(x2, gama2, beta2)
    assert out2.shape == (N2, C2, H2, W2)
    assert jnp.allclose(out2, ref2, atol=1e-4, rtol=1e-4), \
        f"max err {jnp.max(jnp.abs(out2 - ref2))}"

    # --- Third check: bf16 I/O (f32 internal compute), sublane=16 path ------
    x3 = jax.random.normal(jax.random.PRNGKey(0), (2, 4, 16, 16),
                           dtype=jnp.bfloat16)
    out3 = modal_norm(x3, gama, beta)
    out3 = jax.block_until_ready(out3)
    ref3 = modal_norm_ref(x3, gama, beta)
    assert out3.dtype == jnp.bfloat16
    assert jnp.allclose(out3.astype(jnp.float32), ref3, atol=3e-2, rtol=3e-2), \
        f"max err {jnp.max(jnp.abs(out3.astype(jnp.float32) - ref3))}"

    print("KERNEL_OK")
</pallas_src>

<mosaic_0001>
module attributes {stable_mosaic.version = 11 : i64} {
  func.func @_modalnorm_kernel(%arg0: i32, %arg1: memref<1xf32, #tpu.memory_space<smem>>, %arg2: memref<1xf32, #tpu.memory_space<smem>>, %arg3: memref<8x256xf32, #tpu.memory_space<vmem>>, %arg4: memref<8x256xf32, #tpu.memory_space<vmem>>) attributes {dimension_semantics = [#tpu.dimension_semantics<parallel>], iteration_bounds = array<i64: 1>, scalar_prefetch = 0 : i64, scratch_operands = 0 : i64, tpu.core_type = #tpu.core_type<tc>, window_params = [{transform_indices = @transform_0, window_bounds = array<i64: 1>}, {transform_indices = @transform_1, window_bounds = array<i64: 1>}, {transform_indices = @transform_2, window_bounds = array<i64: 8, 256>}, {transform_indices = @transform_3, window_bounds = array<i64: 8, 256>}]} {
    %c0 = arith.constant 0 : index
    %c0_0 = arith.constant 0 : index
    %0 = vector.load %arg3[%c0, %c0_0] : memref<8x256xf32, #tpu.memory_space<vmem>>, vector<8x256xf32>
    %cst = arith.constant dense<0.000000e+00> : vector<8xf32>
    %1 = vector.multi_reduction <add>, %0, %cst [1] : vector<8x256xf32> to vector<8xf32>
    %2 = vector.shape_cast %1 : vector<8xf32> to vector<8x1xf32>
    %cst_1 = arith.constant 3.906250e-03 : f32
    %3 = vector.broadcast %cst_1 : f32 to vector<8x1xf32>
    %4 = arith.mulf %2, %3 : vector<8x1xf32>
    %c0_2 = arith.constant 0 : index
    %c0_3 = arith.constant 0 : index
    %5 = vector.load %arg3[%c0_2, %c0_3] : memref<8x256xf32, #tpu.memory_space<vmem>>, vector<8x256xf32>
    %6 = vector.broadcast %4 : vector<8x1xf32> to vector<8x256xf32>
    %7 = arith.subf %5, %6 : vector<8x256xf32>
    %8 = arith.mulf %7, %7 : vector<8x256xf32>
    %cst_4 = arith.constant dense<0.000000e+00> : vector<8xf32>
    %9 = vector.multi_reduction <add>, %8, %cst_4 [1] : vector<8x256xf32> to vector<8xf32>
    %10 = vector.shape_cast %9 : vector<8xf32> to vector<8x1xf32>
    %cst_5 = arith.constant 0.00392156886 : f32
    %11 = vector.broadcast %cst_5 : f32 to vector<8x1xf32>
    %12 = arith.mulf %10, %11 : vector<8x1xf32>
    %c0_6 = arith.constant 0 : index
    %13 = memref.load %arg1[%c0_6] : memref<1xf32, #tpu.memory_space<smem>>
    %c0_7 = arith.constant 0 : index
    %14 = memref.load %arg2[%c0_7] : memref<1xf32, #tpu.memory_space<smem>>
    %cst_8 = arith.constant 9.99999997E-7 : f32
    %15 = vector.broadcast %cst_8 : f32 to vector<8x1xf32>
    %16 = arith.addf %12, %15 : vector<8x1xf32>
    %17 = math.rsqrt %16 : vector<8x1xf32>
    %18 = vector.broadcast %13 : f32 to vector<8x1xf32>
    %19 = arith.mulf %18, %17 : vector<8x1xf32>
    %20 = arith.mulf %4, %19 : vector<8x1xf32>
    %21 = vector.broadcast %14 : f32 to vector<8x1xf32>
    %22 = arith.subf %21, %20 : vector<8x1xf32>
    %c0_9 = arith.constant 0 : index
    %c0_10 = arith.constant 0 : index
    %23 = vector.load %arg3[%c0_9, %c0_10] : memref<8x256xf32, #tpu.memory_space<vmem>>, vector<8x256xf32>
    %24 = vector.broadcast %19 : vector<8x1xf32> to vector<8x256xf32>
    %25 = arith.mulf %23, %24 : vector<8x256xf32>
    %26 = vector.broadcast %22 : vector<8x1xf32> to vector<8x256xf32>
    %27 = arith.addf %25, %26 : vector<8x256xf32>
    %c0_11 = arith.constant 0 : index
    %c0_12 = arith.constant 0 : index
    %28 = vector.load %arg4[%c0_11, %c0_12] : memref<8x256xf32, #tpu.memory_space<vmem>>, vector<8x256xf32>
    tpu.vector_store %arg4[%c0_11, %c0_12], %27 {strides = array<i32>} : memref<8x256xf32, #tpu.memory_space<vmem>>, vector<8x256xf32>,
    return
  }
  func.func @transform_0(%arg0: i32) -> i32 {
    %c0_i32 = arith.constant 0 : i32
    %c0_i32_0 = arith.constant 0 : i32
    return %c0_i32 : i32
  }
  func.func @transform_1(%arg0: i32) -> i32 {
    %c0_i32 = arith.constant 0 : i32
    %c0_i32_0 = arith.constant 0 : i32
    return %c0_i32 : i32
  }
  func.func @transform_2(%arg0: i32) -> (i32, i32) {
    %c0_i32 = arith.constant 0 : i32
    %c0_i32_0 = arith.constant 0 : i32
    return %arg0, %c0_i32 : i32, i32
  }
  func.func @transform_3(%arg0: i32) -> (i32, i32) {
    %c0_i32 = arith.constant 0 : i32
    %c0_i32_0 = arith.constant 0 : i32
    return %arg0, %c0_i32 : i32, i32
  }
}

</mosaic_0001>

<llo_original>
// kernel: tpu_custom_call.1
$region0: #{tpu_custom_call.1}
  #allocation0 [shape = 'u32[]', space=smem, size = 0x4, offset = 0x4, fixed_abs, tag = 'smem constant byte address 0x4 - core index']
  #allocation1 [shape = 'u32[144,128]{1,0:T(1,128)}', space=vmem, size = 0x12000, scoped, tag = 'internal scratch']
  #allocation2 [shape = 'f32[1]{0:T(128)S(6)}', space=smem, size = 0x200, scoped, tag = 'scoped memory for tpu_custom_call.1']
  #allocation3 [shape = 'f32[1]{0:T(128)S(6)}', space=smem, size = 0x200, scoped, tag = 'scoped memory for tpu_custom_call.1']
  %s0 = inlined_call_operand.<no memory space> [shape: f32[1], index: 0, kind: input, shape index: {}]
  %s1 = inlined_call_operand.<no memory space> [shape: f32[1], index: 1, kind: input, shape index: {}]
  %s2 = inlined_call_operand.hbm [shape: f32[8,256], index: 2, kind: input, shape index: {}]
  %s3 = inlined_call_operand.hbm [shape: f32[8,256], index: 3, kind: output, shape index: {}]
  %s4 = sld [smem:[#allocation0]]
  $region26: #{tpu_custom_call.1} parent=0
    _
  %s6 = ssub.s32 1, %s4
  %s7 = scalar_select 0, %s6, %s4
  %8 = sst [smem:[#allocation2]] %s0
  %9 = sst [smem:[#allocation3]] %s1
  $region1: #{tpu_custom_call.1} parent=0
    #allocation4 [shape = 'u8[8192]{0}', space=vmem, size = 0x2000, scoped, tag = 'input window, operand 2, single buffered']
    #allocation5 [shape = 's32[1]{0}', space=sflag, size = 0x4, scoped, tag = 'scoped memory for tpu_custom_call.1']
    #allocation6 [shape = 's32[1]{0}', space=sflag, size = 0x4, scoped, tag = 'scoped memory for tpu_custom_call.1']
    #allocation7 [shape = 'u8[8192]{0}', space=vmem, size = 0x2000, scoped, tag = 'output window, operand 0, single buffered']
    %10 = vsyncpa [#allocation5], 0
    %11 = vsyncpa [#allocation6], 0
    // Predicated region
    $region2: #{tpu_custom_call.1} parent=1 // pred_check
      _
    $region3: #{tpu_custom_call.1} parent=1 // pred_check_branch
      %13 = sbr.rel (0) target = $region5
    $region4: #{tpu_custom_call.1} parent=1 // pred_region
      _
    $region5: #{tpu_custom_call.1} parent=1 // pred_fallthru
      _
    // Predicated region
    $region6: #{tpu_custom_call.1} parent=1 // pred_check
      _
    $region7: #{tpu_custom_call.1} parent=1 // pred_check_branch
      %15 = sbr.rel (0) target = $region9
    $region8: #{tpu_custom_call.1} parent=1 // pred_region
      _
    $region9: #{tpu_custom_call.1} parent=1 // pred_fallthru
      _
    // Predicated region
    $region10: #{tpu_custom_call.1} parent=1 // pred_check
      _
    $region11: #{tpu_custom_call.1} parent=1 // pred_check_branch
      %17 = sbr.rel (0) target = $region13
    $region12: #{tpu_custom_call.1} parent=1 // pred_region
      %s19 = ssub.s32 256, 256
      %20 = vsyncadd [#allocation5], %s19
      %s22 = sshll.u32 [#allocation4], 4
      %s23 = int_to_ptr.vmem [resolvable:$true] %s22
      %25 = dma.hbm_to_vmem [thread:$0]  %s2, 256, %s23, [#allocation5]
    $region13: #{tpu_custom_call.1} parent=1 // pred_fallthru
      _
    // Predicated region
    $region14: #{tpu_custom_call.1} parent=1 // pred_check
      _
    $region15: #{tpu_custom_call.1} parent=1 // pred_check_branch
      %27 = sbr.rel (0) target = $region17
    $region16: #{tpu_custom_call.1} parent=1 // pred_region
      %28 = dma.done [#allocation5], 256
    $region17: #{tpu_custom_call.1} parent=1 // pred_fallthru
      _
    %v29 = vld [vmem:[#allocation4] sm:$0xff]
    %v30 = vld [vmem:[#allocation4 + $0x8] sm:$0xff]
    %v31 = vadd.f32 %v29, %v30
    %32 = vadd.xlane.f32.xlu0 %v31
    %v33 = vpop.xlane.xlu0 %32
    %v34 = vmul.f32 %v33, 0.00390625
    %v35 = vsub.f32 %v29, %v34
    %v36 = vsub.f32 %v30, %v34
    %v37 = vmul.f32 %v35, %v35
    %v38 = vmul.f32 %v36, %v36
    %v39 = vadd.f32 %v37, %v38
    %40 = vadd.xlane.f32.xlu0 %v39
    %v41 = vpop.xlane.xlu0 %40
    %v42 = vmul.f32 %v41, 0.003921569
    %s43 = sld [smem:[#allocation2]]
    %s44 = sld [smem:[#allocation3]]
    %v45 = vadd.f32 %v42, 1e-06
    %v46 = vrsqrt.pop %v45
    %v47 = vstv %s43
    %v48 = vmul.f32 %v47, %v46
    %v49 = vmul.f32 %v34, %v48
    %v50 = vstv %s44
    %v51 = vsub.f32 %v50, %v49
    %v52 = vmul.f32 %v29, %v48
    %v53 = vmul.f32 %v30, %v48
    %v54 = vadd.f32 %v52, %v51
    %v55 = vadd.f32 %v53, %v51
    %56 = vst [vmem:[#allocation7] sm:$0xff] %v54
    %57 = vst [vmem:[#allocation7 + $0x8] sm:$0xff] %v55
    // Predicated region
    $region18: #{tpu_custom_call.1} parent=1 // pred_check
      _
    $region19: #{tpu_custom_call.1} parent=1 // pred_check_branch
      %59 = sbr.rel (0) target = $region21
    $region20: #{tpu_custom_call.1} parent=1 // pred_region
      %s61 = ssub.s32 256, 256
      %62 = vsyncadd [#allocation6], %s61
      %s64 = sshll.u32 [#allocation7], 4
      %s65 = int_to_ptr.vmem [resolvable:$true] %s64
      %67 = dma.vmem_to_hbm [thread:$0]  %s65, 256, %s3, [#allocation6]
    $region21: #{tpu_custom_call.1} parent=1 // pred_fallthru
      _
    // Predicated region
    $region22: #{tpu_custom_call.1} parent=1 // pred_check
      _
    $region23: #{tpu_custom_call.1} parent=1 // pred_check_branch
      %69 = sbr.rel (0) target = $region25
    $region24: #{tpu_custom_call.1} parent=1 // pred_region
      %70 = dma.done [#allocation6], 256
    $region25: #{tpu_custom_call.1} parent=1 // pred_fallthru
      _
    %71 = vsyncpa [#allocation5], 1
    %72 = vsyncpa [#allocation6], 1

</llo_original>
